<compile_context>
chip_gen: v5e
topology: v5e:2x2
jax: 0.10.0
libtpu: 0.0.40
codegen_flags: <defaults>
</compile_context>

<pallas_src>
import jax
import jax.numpy as jnp
from jax.experimental import pallas as pl
from jax.experimental.pallas import tpu as pltpu

BN_EPS = 1e-5


def _linear_block_kernel(x_ref, w_ref, gamma_ref, beta_ref, o_ref, acc_ref):
    """One (feature-stripe j, contraction-chunk k) grid step.

    Grid = (n_j, n_k); k (d_in reduction) is the last / inner axis. The f32
    accumulator lives in VMEM scratch, is zeroed at k == 0, and the BN + ReLU
    epilogue runs at the last k step once the full (N, tn) pre-activation
    stripe is available.
    """
    k = pl.program_id(1)

    @pl.when(k == 0)
    def _init():
        acc_ref[...] = jnp.zeros_like(acc_ref)

    # MXU matmul: bf16 / f32 inputs fed directly, accumulation in f32.
    acc_ref[...] += jnp.dot(
        x_ref[...], w_ref[...], preferred_element_type=jnp.float32
    )

    @pl.when(k == pl.num_programs(1) - 1)
    def _epilogue():
        y = acc_ref[...]                                   # (N, tn) f32
        # Linear bias intentionally omitted: training-mode BN's mean
        # subtraction cancels any constant per-feature shift exactly.
        mean = jnp.mean(y, axis=0, keepdims=True)          # (1, tn)
        yc = y - mean                                      # centered, reused
        var = jnp.mean(yc * yc, axis=0, keepdims=True)     # biased variance
        xhat = yc * jax.lax.rsqrt(var + BN_EPS)
        out = gamma_ref[...] * xhat + beta_ref[...]
        o_ref[...] = jnp.maximum(out, 0.0).astype(o_ref.dtype)


def _pick_tile(dim, candidates=(512, 256, 128)):
    """Largest lane-friendly tile that divides `dim`, else the full dim."""
    for c in candidates:
        if dim % c == 0:
            return c
    return dim


def linear_block(x, w_t, gamma, beta, *, out_dtype=None, tn=None, tk=None):
    """Fused Linear (no bias) + BatchNorm1d(train) + ReLU forward.

    x:     (N, d_in)     batch first, features last.
    w_t:   (d_in, d_out) pre-transposed nn.Linear weight.
    gamma: (1, d_out)    BatchNorm1d weight.
    beta:  (1, d_out)    BatchNorm1d bias.
    """
    n, d_in = x.shape
    d_out = w_t.shape[1]
    out_dtype = out_dtype or x.dtype

    tn = tn or _pick_tile(d_out)   # lane-dense output stripe
    tk = tk or _pick_tile(d_in)    # contraction chunk
    assert d_out % tn == 0 and d_in % tk == 0
    n_j = d_out // tn
    n_k = d_in // tk

    grid_spec = pltpu.PrefetchScalarGridSpec(
        num_scalar_prefetch=0,
        grid=(n_j, n_k),
        in_specs=[
            # x chunk (N, tk): depends only on k -> double-buffered across the
            # inner reduction loop, re-streamed per feature stripe.
            pl.BlockSpec((n, tk), lambda j, k: (0, k)),
            pl.BlockSpec((tk, tn), lambda j, k: (k, j)),
            pl.BlockSpec((1, tn), lambda j, k: (0, j)),
            pl.BlockSpec((1, tn), lambda j, k: (0, j)),
        ],
        # Output stripe stays VMEM-resident across the k (reduction) axis.
        out_specs=pl.BlockSpec((n, tn), lambda j, k: (0, j)),
        scratch_shapes=[pltpu.VMEM((n, tn), jnp.float32)],
    )

    return pl.pallas_call(
        _linear_block_kernel,
        out_shape=jax.ShapeDtypeStruct((n, d_out), out_dtype),
        grid_spec=grid_spec,
        compiler_params=pltpu.CompilerParams(
            # Feature stripes are independent -> shard across TensorCores
            # (v7x megacore); the d_in contraction must stay "arbitrary".
            dimension_semantics=("parallel", "arbitrary"),
        ),
    )(x, w_t, gamma, beta)


def init_params(key, d_in, d_out, dtype=jnp.float32):
    """Deterministic synthetic init mimicking nn.Linear + nn.BatchNorm1d."""
    k_w, k_b = jax.random.split(key)
    bound = 1.0 / jnp.sqrt(jnp.float32(d_in))
    # PyTorch Linear weight is (d_out, d_in); we store its transpose.
    w_t = jax.random.uniform(k_w, (d_in, d_out), jnp.float32, -bound, bound)
    w_t = w_t.astype(dtype)
    b = jax.random.uniform(k_b, (1, d_out), jnp.float32, -bound, bound)
    gamma = jnp.ones((1, d_out), jnp.float32)   # BatchNorm1d weight
    beta = jnp.zeros((1, d_out), jnp.float32)   # BatchNorm1d bias
    return w_t, b, gamma, beta


def reference(x, w_t, b, gamma, beta):
    """Full PyTorch-equivalent semantics (Linear WITH bias, train-mode BN,
    ReLU) — including the bias shows that dropping it in the kernel is exact."""
    y = x.astype(jnp.float32) @ w_t.astype(jnp.float32) + b
    mean = jnp.mean(y, axis=0, keepdims=True)
    var = jnp.mean((y - mean) ** 2, axis=0, keepdims=True)
    out = gamma * (y - mean) * jax.lax.rsqrt(var + BN_EPS) + beta
    return jnp.maximum(out, 0.0)


if __name__ == "__main__":
    key = jax.random.PRNGKey(0)
    k_x, k_p = jax.random.split(key)

    # Small but hardware-friendly shapes: N multiple of 8 (f32 sublane),
    # feature dims multiples of 128 (lane-dense stores, full MXU tiles).
    # Tiles resolve to tn=128, tk=256 -> grid (3, 3), exercising the pipeline.
    N, D_IN, D_OUT = 64, 768, 384
    x = jax.random.normal(k_x, (N, D_IN), jnp.float32)
    w_t, b, gamma, beta = init_params(k_p, D_IN, D_OUT)

    out = linear_block(x, w_t, gamma, beta)
    out = jax.block_until_ready(out)

    ref = reference(x, w_t, b, gamma, beta)
    assert out.shape == (N, D_OUT)
    assert jnp.allclose(out, ref, atol=1e-4, rtol=1e-4), "mismatch vs JAX reference"

    print("KERNEL_OK")
</pallas_src>

<mosaic_0001>
module attributes {stable_mosaic.version = 11 : i64} {
  func.func @_linear_block_kernel(%arg0: i32, %arg1: i32, %arg2: memref<64x256xf32, #tpu.memory_space<vmem>>, %arg3: memref<256x128xf32, #tpu.memory_space<vmem>>, %arg4: memref<1x128xf32, #tpu.memory_space<vmem>>, %arg5: memref<1x128xf32, #tpu.memory_space<vmem>>, %arg6: memref<64x128xf32, #tpu.memory_space<vmem>>, %arg7: memref<64x128xf32, #tpu.memory_space<vmem>>) attributes {dimension_semantics = [#tpu.dimension_semantics<parallel>, #tpu.dimension_semantics<arbitrary>], iteration_bounds = array<i64: 3, 3>, scalar_prefetch = 0 : i64, scratch_operands = 1 : i64, tpu.core_type = #tpu.core_type<tc>, window_params = [{transform_indices = @transform_0, window_bounds = array<i64: 64, 256>}, {transform_indices = @transform_1, window_bounds = array<i64: 256, 128>}, {transform_indices = @transform_2, window_bounds = array<i64: 1, 128>}, {transform_indices = @transform_3, window_bounds = array<i64: 1, 128>}, {transform_indices = @transform_4, window_bounds = array<i64: 64, 128>}]} {
    %c0_i32 = arith.constant 0 : i32
    %0 = arith.cmpi eq, %arg1, %c0_i32 : i32
    %1 = arith.extui %0 : i1 to i32
    %c0_i32_0 = arith.constant 0 : i32
    %2 = arith.cmpi ne, %1, %c0_i32_0 : i32
    scf.if %2 {
      %cst_9 = arith.constant 0.000000e+00 : f32
      %12 = vector.broadcast %cst_9 : f32 to vector<64x128xf32>
      %c0_10 = arith.constant 0 : index
      %c0_11 = arith.constant 0 : index
      %13 = vector.load %arg7[%c0_10, %c0_11] : memref<64x128xf32, #tpu.memory_space<vmem>>, vector<64x128xf32>
      tpu.vector_store %arg7[%c0_10, %c0_11], %12 {strides = array<i32>} : memref<64x128xf32, #tpu.memory_space<vmem>>, vector<64x128xf32>,
    } else {
    }
    %c0 = arith.constant 0 : index
    %c0_1 = arith.constant 0 : index
    %3 = vector.load %arg7[%c0, %c0_1] : memref<64x128xf32, #tpu.memory_space<vmem>>, vector<64x128xf32>
    %c0_2 = arith.constant 0 : index
    %c0_3 = arith.constant 0 : index
    %4 = vector.load %arg2[%c0_2, %c0_3] : memref<64x256xf32, #tpu.memory_space<vmem>>, vector<64x256xf32>
    %c0_4 = arith.constant 0 : index
    %c0_5 = arith.constant 0 : index
    %5 = vector.load %arg3[%c0_4, %c0_5] : memref<256x128xf32, #tpu.memory_space<vmem>>, vector<256x128xf32>
    %cst = arith.constant dense<0.000000e+00> : vector<64x128xf32>
    %6 = tpu.matmul %4, %5, %cst {dimension_numbers = #tpu.dot_dimension_numbers<[1], [0], [0], [1], [0, 0, 1, 1], [], []>} : vector<64x256xf32>, vector<256x128xf32>, vector<64x128xf32> -> vector<64x128xf32>
    %7 = arith.addf %3, %6 : vector<64x128xf32>
    %c0_6 = arith.constant 0 : index
    %c0_7 = arith.constant 0 : index
    %8 = vector.load %arg7[%c0_6, %c0_7] : memref<64x128xf32, #tpu.memory_space<vmem>>, vector<64x128xf32>
    tpu.vector_store %arg7[%c0_6, %c0_7], %7 {strides = array<i32>} : memref<64x128xf32, #tpu.memory_space<vmem>>, vector<64x128xf32>,
    %c2_i32 = arith.constant 2 : i32
    %9 = arith.cmpi eq, %arg1, %c2_i32 : i32
    %10 = arith.extui %9 : i1 to i32
    %c0_i32_8 = arith.constant 0 : i32
    %11 = arith.cmpi ne, %10, %c0_i32_8 : i32
    scf.if %11 {
      %c0_9 = arith.constant 0 : index
      %c0_10 = arith.constant 0 : index
      %12 = vector.load %arg7[%c0_9, %c0_10] : memref<64x128xf32, #tpu.memory_space<vmem>>, vector<64x128xf32>
      %cst_11 = arith.constant dense<0.000000e+00> : vector<128xf32>
      %13 = vector.multi_reduction <add>, %12, %cst_11 [0] : vector<64x128xf32> to vector<128xf32>
      %14 = vector.shape_cast %13 : vector<128xf32> to vector<1x128xf32>
      %cst_12 = arith.constant 6.400000e+01 : f32
      %15 = vector.broadcast %cst_12 : f32 to vector<1x128xf32>
      %16 = arith.divf %14, %15 : vector<1x128xf32>
      %17 = vector.broadcast %16 : vector<1x128xf32> to vector<64x128xf32>
      %18 = arith.subf %12, %17 : vector<64x128xf32>
      %19 = arith.mulf %18, %18 : vector<64x128xf32>
      %cst_13 = arith.constant dense<0.000000e+00> : vector<128xf32>
      %20 = vector.multi_reduction <add>, %19, %cst_13 [0] : vector<64x128xf32> to vector<128xf32>
      %21 = vector.shape_cast %20 : vector<128xf32> to vector<1x128xf32>
      %cst_14 = arith.constant 6.400000e+01 : f32
      %22 = vector.broadcast %cst_14 : f32 to vector<1x128xf32>
      %23 = arith.divf %21, %22 : vector<1x128xf32>
      %cst_15 = arith.constant 9.99999974E-6 : f32
      %24 = vector.broadcast %cst_15 : f32 to vector<1x128xf32>
      %25 = arith.addf %23, %24 : vector<1x128xf32>
      %26 = math.rsqrt %25 : vector<1x128xf32>
      %27 = vector.broadcast %26 : vector<1x128xf32> to vector<64x128xf32>
      %28 = arith.mulf %18, %27 : vector<64x128xf32>
      %c0_16 = arith.constant 0 : index
      %c0_17 = arith.constant 0 : index
      %29 = vector.load %arg4[%c0_16, %c0_17] : memref<1x128xf32, #tpu.memory_space<vmem>>, vector<1x128xf32>
      %30 = vector.broadcast %29 : vector<1x128xf32> to vector<64x128xf32>
      %31 = arith.mulf %30, %28 : vector<64x128xf32>
      %c0_18 = arith.constant 0 : index
      %c0_19 = arith.constant 0 : index
      %32 = vector.load %arg5[%c0_18, %c0_19] : memref<1x128xf32, #tpu.memory_space<vmem>>, vector<1x128xf32>
      %33 = vector.broadcast %32 : vector<1x128xf32> to vector<64x128xf32>
      %34 = arith.addf %31, %33 : vector<64x128xf32>
      %cst_20 = arith.constant 0.000000e+00 : f32
      %35 = vector.broadcast %cst_20 : f32 to vector<64x128xf32>
      %36 = arith.maximumf %34, %35 : vector<64x128xf32>
      %c0_21 = arith.constant 0 : index
      %c0_22 = arith.constant 0 : index
      %37 = vector.load %arg6[%c0_21, %c0_22] : memref<64x128xf32, #tpu.memory_space<vmem>>, vector<64x128xf32>
      tpu.vector_store %arg6[%c0_21, %c0_22], %36 {strides = array<i32>} : memref<64x128xf32, #tpu.memory_space<vmem>>, vector<64x128xf32>,
    } else {
    }
    return
  }
  func.func @transform_0(%arg0: i32, %arg1: i32) -> (i32, i32) {
    %c0_i32 = arith.constant 0 : i32
    %c0_i32_0 = arith.constant 0 : i32
    return %c0_i32, %arg1 : i32, i32
  }
  func.func @transform_1(%arg0: i32, %arg1: i32) -> (i32, i32) {
    %c0_i32 = arith.constant 0 : i32
    return %arg1, %arg0 : i32, i32
  }
  func.func @transform_2(%arg0: i32, %arg1: i32) -> (i32, i32) {
    %c0_i32 = arith.constant 0 : i32
    %c0_i32_0 = arith.constant 0 : i32
    return %c0_i32, %arg0 : i32, i32
  }
  func.func @transform_3(%arg0: i32, %arg1: i32) -> (i32, i32) {
    %c0_i32 = arith.constant 0 : i32
    %c0_i32_0 = arith.constant 0 : i32
    return %c0_i32, %arg0 : i32, i32
  }
  func.func @transform_4(%arg0: i32, %arg1: i32) -> (i32, i32) {
    %c0_i32 = arith.constant 0 : i32
    %c0_i32_0 = arith.constant 0 : i32
    return %c0_i32, %arg0 : i32, i32
  }
}

</mosaic_0001>

<llo_original>
// kernel: tpu_custom_call.1
$region0: #{tpu_custom_call.1}
  #allocation0 [shape = 'u32[]', space=smem, size = 0x4, offset = 0x4, fixed_abs, tag = 'smem constant byte address 0x4 - core index']
  #allocation1 [shape = 'u32[72,128]{1,0:T(1,128)}', space=vmem, size = 0x9000, scoped, tag = 'internal scratch']
  #allocation2 [shape = 'f32[64,128]{1,0:T(8,128)}', space=vmem, size = 0x8000, scoped, tag = 'scratch operand']
  %s0 = inlined_call_operand.hbm [shape: f32[64,768], index: 0, kind: input, shape index: {}]
  %s1 = inlined_call_operand.hbm [shape: f32[768,384], index: 1, kind: input, shape index: {}]
  %s2 = inlined_call_operand.hbm [shape: f32[1,384], index: 2, kind: input, shape index: {}]
  %s3 = inlined_call_operand.hbm [shape: f32[1,384], index: 3, kind: input, shape index: {}]
  %s4 = inlined_call_operand.hbm [shape: f32[64,384], index: 4, kind: output, shape index: {}]
  %s5 = sld [smem:[#allocation0]]
  $region73: #{tpu_custom_call.1} parent=0
    _
  %s7 = ssub.s32 1, %s5
  %s8 = scalar_select 0, %s7, %s5
  $region1: #{tpu_custom_call.1} parent=0
    #allocation3 [shape = 'u8[131072]{0}', space=vmem, size = 0x20000, scoped, tag = 'input window, operand 0']
    #allocation4 [shape = 's32[2]{0}', space=sflag, size = 0x8, scoped, tag = 'scoped memory for tpu_custom_call.1']
    #allocation5 [shape = 's32[2]{0}', space=sflag, size = 0x8, scoped, tag = 'scoped memory for tpu_custom_call.1']
    #allocation6 [shape = 'u8[262144]{0}', space=vmem, size = 0x40000, scoped, tag = 'input window, operand 1']
    #allocation7 [shape = 's32[2]{0}', space=sflag, size = 0x8, scoped, tag = 'scoped memory for tpu_custom_call.1']
    #allocation8 [shape = 'u8[1024]{0}', space=vmem, size = 0x400, scoped, tag = 'input window, operand 2']
    #allocation9 [shape = 'u8[1024]{0}', space=vmem, size = 0x400, scoped, tag = 'input window, operand 3']
    #allocation10 [shape = 's32[2]{0}', space=sflag, size = 0x8, scoped, tag = 'scoped memory for tpu_custom_call.1']
    #allocation11 [shape = 'u8[65536]{0}', space=vmem, size = 0x10000, scoped, tag = 'output window, operand 0']
    %9 = vsyncpa [#allocation4], 0
    %s10 = scalar_lea.sflag [#allocation4], 1
    %11 = vsyncpa %s10, 0
    %12 = vsyncpa [#allocation7], 0
    %s13 = scalar_lea.sflag [#allocation7], 1
    %14 = vsyncpa %s13, 0
    %15 = vsyncpa [#allocation10], 0
    %s16 = scalar_lea.sflag [#allocation10], 1
    %17 = vsyncpa %s16, 0
    %18 = vsyncpa [#allocation5], 0
    %s19 = scalar_lea.sflag [#allocation5], 1
    %20 = vsyncpa %s19, 0
    loop: start=0, step=1, limit=11
    $region2: #{tpu_custom_call.1} parent=1 // loop_pre_header
      _
    $region3: #{tpu_custom_call.1} parent=1 // loop_header
      %s22 = sphi 0, %s26
      %p23 = scmp.ge.s32.totalorder %s22, 11
      %s29 = sphi 0, %s41
      %s30 = sphi 0, %s37
      %s31 = sphi 0, %s29
      %s32 = sphi 0, %s30
      %s33 = sphi 0, %s31
      %s34 = sphi 0, %s32
      %s44 = sphi 0, %s46
      %s47 = sphi 0, %s44
      %s48 = sphi 0, %s47
      %s64 = sphi 0, %s48
      %s72 = sphi 0, %s74
      %s75 = sphi 0, %s72
      %s76 = sphi 0, %s75
      %s92 = sphi 0, %s76
      %s98 = sphi 0, %s100
      %s101 = sphi 0, %s98
      %s102 = sphi 0, %s101
      %s118 = sphi 0, %s102
      %s124 = sphi 0, %s126
      %s127 = sphi 0, %s124
      %s128 = sphi 0, %s127
      %s144 = sphi 0, %s128
      %s150 = sphi 0, %s152
      %s153 = sphi 0, %s150
      %s154 = sphi 0, %s153
      %s170 = sphi 0, %s154
    $region4: #{tpu_custom_call.1} parent=1 // loop_header_branch
      %25 = sbr.rel (%p23) target = $region8
    $region5: #{tpu_custom_call.1} parent=1 // loop_body
      %s27 = ssub.s32 %s22, 1
      %s28 = ssub.s32 %s22, 2
      %s35 = sadd.s32 1, %s30
      %p36 = scmp.ge.s32.totalorder %s35, 3
      %s37 = scalar_select %p36, 0, %s35
      %s38 = sadd.s32 1, %s29
      %s39 = scalar_select %p36, %s38, %s29
      %p40 = scmp.ge.s32.totalorder %s39, 3
      %s41 = scalar_select %p40, 0, %s39
      %s42 = ssub.s32 %s30, %s37
      %p43 = scmp.eq.s32.totalorder %s42, 0
      %s45 = sadd.s32 %s44, 1
      %s46 = scalar_select %p43, %s44, %s45
      %p49 = pneg %p43
      %p50 = scmp.eq.s32.totalorder %s22, 8
      %p51 = por %p49, %p50
      %p52 = scmp.ne.s32.totalorder %s44, %s47
      %p53 = scmp.eq.s32.totalorder %s22, 0
      %p54 = por %p52, %p53
      %p55 = scmp.ne.s32.totalorder %s44, %s47
      %p56 = scmp.eq.s32.totalorder %s27, 8
      %p57 = por %p55, %p56
      %p58 = scmp.ne.s32.totalorder %s47, %s48
      %p59 = scmp.eq.s32.totalorder %s27, 0
      %p60 = por %p58, %p59
      %p61 = scmp.ne.s32.totalorder %s47, %s48
      %p62 = scmp.eq.s32.totalorder %s28, 8
      %p63 = por %p61, %p62
      %p65 = scmp.ne.s32.totalorder %s48, %s64
      %p66 = scmp.eq.s32.totalorder %s28, 0
      %p67 = por %p65, %p66
      %s68 = ssub.s32 %s30, %s37
      %s69 = ssub.s32 %s29, %s41
      %s70 = sor.u32 %s68, %s69
      %p71 = scmp.eq.s32.totalorder %s70, 0
      %s73 = sadd.s32 %s72, 1
      %s74 = scalar_select %p71, %s72, %s73
      %p77 = pneg %p71
      %p78 = scmp.eq.s32.totalorder %s22, 8
      %p79 = por %p77, %p78
      %p80 = scmp.ne.s32.totalorder %s72, %s75
      %p81 = scmp.eq.s32.totalorder %s22, 0
      %p82 = por %p80, %p81
      %p83 = scmp.ne.s32.totalorder %s72, %s75
      %p84 = scmp.eq.s32.totalorder %s27, 8
      %p85 = por %p83, %p84
      %p86 = scmp.ne.s32.totalorder %s75, %s76
      %p87 = scmp.eq.s32.totalorder %s27, 0
      %p88 = por %p86, %p87
      %p89 = scmp.ne.s32.totalorder %s75, %s76
      %p90 = scmp.eq.s32.totalorder %s28, 8
      %p91 = por %p89, %p90
      %p93 = scmp.ne.s32.totalorder %s76, %s92
      %p94 = scmp.eq.s32.totalorder %s28, 0
      %p95 = por %p93, %p94
      %s96 = ssub.s32 %s29, %s41
      %p97 = scmp.eq.s32.totalorder %s96, 0
      %s99 = sadd.s32 %s98, 1
      %s100 = scalar_select %p97, %s98, %s99
      %p103 = pneg %p97
      %p104 = scmp.eq.s32.totalorder %s22, 8
      %p105 = por %p103, %p104
      %p106 = scmp.ne.s32.totalorder %s98, %s101
      %p107 = scmp.eq.s32.totalorder %s22, 0
      %p108 = por %p106, %p107
      %p109 = scmp.ne.s32.totalorder %s98, %s101
      %p110 = scmp.eq.s32.totalorder %s27, 8
      %p111 = por %p109, %p110
      %p112 = scmp.ne.s32.totalorder %s101, %s102
      %p113 = scmp.eq.s32.totalorder %s27, 0
      %p114 = por %p112, %p113
      %p115 = scmp.ne.s32.totalorder %s101, %s102
      %p116 = scmp.eq.s32.totalorder %s28, 8
      %p117 = por %p115, %p116
      %p119 = scmp.ne.s32.totalorder %s102, %s118
      %p120 = scmp.eq.s32.totalorder %s28, 0
      %p121 = por %p119, %p120
      %s122 = ssub.s32 %s29, %s41
      %p123 = scmp.eq.s32.totalorder %s122, 0
      %s125 = sadd.s32 %s124, 1
      %s126 = scalar_select %p123, %s124, %s125
      %p129 = pneg %p123
      %p130 = scmp.eq.s32.totalorder %s22, 8
      %p131 = por %p129, %p130
      %p132 = scmp.ne.s32.totalorder %s124, %s127
      %p133 = scmp.eq.s32.totalorder %s22, 0
      %p134 = por %p132, %p133
      %p135 = scmp.ne.s32.totalorder %s124, %s127
      %p136 = scmp.eq.s32.totalorder %s27, 8
      %p137 = por %p135, %p136
      %p138 = scmp.ne.s32.totalorder %s127, %s128
      %p139 = scmp.eq.s32.totalorder %s27, 0
      %p140 = por %p138, %p139
      %p141 = scmp.ne.s32.totalorder %s127, %s128
      %p142 = scmp.eq.s32.totalorder %s28, 8
      %p143 = por %p141, %p142
      %p145 = scmp.ne.s32.totalorder %s128, %s144
      %p146 = scmp.eq.s32.totalorder %s28, 0
      %p147 = por %p145, %p146
      %s148 = ssub.s32 %s29, %s41
      %p149 = scmp.eq.s32.totalorder %s148, 0
      %s151 = sadd.s32 %s150, 1
      %s152 = scalar_select %p149, %s150, %s151
      %p155 = pneg %p149
      %p156 = scmp.eq.s32.totalorder %s22, 8
      %p157 = por %p155, %p156
      %p158 = scmp.ne.s32.totalorder %s150, %s153
      %p159 = scmp.eq.s32.totalorder %s22, 0
      %p160 = por %p158, %p159
      %p161 = scmp.ne.s32.totalorder %s150, %s153
      %p162 = scmp.eq.s32.totalorder %s27, 8
      %p163 = por %p161, %p162
      %p164 = scmp.ne.s32.totalorder %s153, %s154
      %p165 = scmp.eq.s32.totalorder %s27, 0
      %p166 = por %p164, %p165
      %p167 = scmp.ne.s32.totalorder %s153, %s154
      %p168 = scmp.eq.s32.totalorder %s28, 8
      %p169 = por %p167, %p168
      %p171 = scmp.ne.s32.totalorder %s154, %s170
      %p172 = scmp.eq.s32.totalorder %s28, 0
      %p173 = por %p171, %p172
      %p174 = scmp.le.s32.totalorder 1, %s22
      %p175 = scmp.lt.s32.totalorder %s22, 10
      %p176 = pnand %p174, %p175
      %p177 = pneg %p176
      // Predicated region
      $region9: #{tpu_custom_call.1} parent=5 // pred_check
        _
      $region10: #{tpu_custom_call.1} parent=5 // pred_check_branch
        %179 = sbr.rel (%p176) target = $region12
      $region11: #{tpu_custom_call.1} parent=5 // pred_region
        %s180 = ssub.s32 %s22, 1
      $region12: #{tpu_custom_call.1} parent=5 // pred_fallthru
        _
      %p181 = scmp.lt.s32.totalorder %s22, 9
      // Predicated region
      $region13: #{tpu_custom_call.1} parent=5 // pred_check
        %p182 = pneg %p181
      $region14: #{tpu_custom_call.1} parent=5 // pred_check_branch
        %184 = sbr.rel (%p182) target = $region16
      $region15: #{tpu_custom_call.1} parent=5 // pred_region
        // Predicated region
        $region17: #{tpu_custom_call.1} parent=15 // pred_check
          %p185 = pneg %p54
        $region18: #{tpu_custom_call.1} parent=15 // pred_check_branch
          %187 = sbr.rel (%p185) target = $region20
        $region19: #{tpu_custom_call.1} parent=15 // pred_region
          %s188 = sand.u32 %s44, 1
          %s189 = scalar_lea.sflag [#allocation4], %s188
          %s190 = sand.u32 %s44, 1
          %s191 = smul.addr %s190, 128
          %s192 = scalar_lea.vmem [#allocation3], %s191
          %s193 = smul.u32 2, %s30
          %195 = vsyncadd %s189, 0
          %s196 = smul.addr %s193, 8
          %s197 = scalar_lea.hbm %s0, %s196
          %s198 = sshll.u32 %s197, 4
          %s199 = int_to_ptr.hbm [resolvable:$true] %s198
          %s200 = sshll.u32 %s192, 4
          %s201 = int_to_ptr.vmem [resolvable:$true] %s200
          %206 = dma.hbm_to_vmem [thread:$0]  %s199, 2048, %s201, %s189, 768, 256, 16
        $region20: #{tpu_custom_call.1} parent=15 // pred_fallthru
          _
        // Predicated region
        $region21: #{tpu_custom_call.1} parent=15 // pred_check
          %p207 = pneg %p82
        $region22: #{tpu_custom_call.1} parent=15 // pred_check_branch
          %209 = sbr.rel (%p207) target = $region24
        $region23: #{tpu_custom_call.1} parent=15 // pred_region
          %s210 = sand.u32 %s22, 1
          %s211 = scalar_lea.sflag [#allocation7], %s210
          %s212 = sand.u32 %s72, 1
          %s213 = smul.addr %s212, 256
          %s214 = scalar_lea.vmem [#allocation6], %s213
          %s215 = smul.u32 32, %s30
          %217 = vsyncadd %s211, 0
          %s218 = smul.addr %s215, 3
          %s219 = sadd.s32 %s29, %s218
          %s220 = smul.addr %s219, 8
          %s221 = scalar_lea.hbm %s1, %s220
          %s222 = sshll.u32 %s221, 4
          %s223 = int_to_ptr.hbm [resolvable:$true] %s222
          %s224 = sshll.u32 %s214, 4
          %s225 = int_to_ptr.vmem [resolvable:$true] %s224
          %230 = dma.hbm_to_vmem [thread:$0]  %s223, 4096, %s225, %s211, 384, 128, 8
        $region24: #{tpu_custom_call.1} parent=15 // pred_fallthru
          _
        // Predicated region
        $region25: #{tpu_custom_call.1} parent=15 // pred_check
          %p231 = pneg %p108
        $region26: #{tpu_custom_call.1} parent=15 // pred_check_branch
          %233 = sbr.rel (%p231) target = $region28
        $region27: #{tpu_custom_call.1} parent=15 // pred_region
          %s234 = sand.u32 %s22, 1
          %s235 = scalar_lea.sflag [#allocation7], %s234
          %s236 = sand.u32 %s98, 1
          %s237 = scalar_lea.vmem [#allocation8], %s236
          %239 = vsyncadd %s235, 0
          %s240 = scalar_lea.hbm %s2, %s29
          %s242 = sshll.u32 %s240, 4
          %s243 = int_to_ptr.hbm [resolvable:$true] %s242
          %s244 = sshll.u32 %s237, 4
          %s245 = int_to_ptr.vmem [resolvable:$true] %s244
          %247 = dma.hbm_to_vmem [thread:$0]  %s243, 16, %s245, %s235
        $region28: #{tpu_custom_call.1} parent=15 // pred_fallthru
          _
        // Predicated region
        $region29: #{tpu_custom_call.1} parent=15 // pred_check
          %p248 = pneg %p134
        $region30: #{tpu_custom_call.1} parent=15 // pred_check_branch
          %250 = sbr.rel (%p248) target = $region32
        $region31: #{tpu_custom_call.1} parent=15 // pred_region
          %s251 = sand.u32 %s124, 1
          %s252 = scalar_lea.sflag [#allocation10], %s251
          %s253 = sand.u32 %s124, 1
          %s254 = scalar_lea.vmem [#allocation9], %s253
          %256 = vsyncadd %s252, 0
          %s257 = scalar_lea.hbm %s3, %s29
          %s259 = sshll.u32 %s257, 4
          %s260 = int_to_ptr.hbm [resolvable:$true] %s259
          %s261 = sshll.u32 %s254, 4
          %s262 = int_to_ptr.vmem [resolvable:$true] %s261
          %264 = dma.hbm_to_vmem [thread:$0]  %s260, 16, %s262, %s252
        $region32: #{tpu_custom_call.1} parent=15 // pred_fallthru
          _
      $region16: #{tpu_custom_call.1} parent=5 // pred_fallthru
        _
      %p265 = scmp.le.s32.totalorder 1, %s22
      %p266 = scmp.lt.s32.totalorder %s22, 10
      %p267 = pnand %p265, %p266
      %p268 = pneg %p267
      // Predicated region
      $region33: #{tpu_custom_call.1} parent=5 // pred_check
        _
      $region34: #{tpu_custom_call.1} parent=5 // pred_check_branch
        %270 = sbr.rel (%p267) target = $region36
      $region35: #{tpu_custom_call.1} parent=5 // pred_region
        %s271 = ssub.s32 %s22, 1
        %s272 = sand.u32 %s47, 1
        %s273 = scalar_lea.sflag [#allocation4], %s272
        %s274 = sand.u32 %s47, 1
        %s275 = smul.addr %s274, 128
        %s276 = scalar_lea.vmem [#allocation3], %s275
        // Predicated region
        $region37: #{tpu_custom_call.1} parent=35 // pred_check
          %p277 = pneg %p60
        $region38: #{tpu_custom_call.1} parent=35 // pred_check_branch
          %279 = sbr.rel (%p277) target = $region40
        $region39: #{tpu_custom_call.1} parent=35 // pred_region
          %281 = dma.done %s273, 2048
        $region40: #{tpu_custom_call.1} parent=35 // pred_fallthru
          _
        %s282 = sand.u32 %s27, 1
        %s283 = scalar_lea.sflag [#allocation7], %s282
        %s284 = sand.u32 %s75, 1
        %s285 = smul.addr %s284, 256
        %s286 = scalar_lea.vmem [#allocation6], %s285
        // Predicated region
        $region41: #{tpu_custom_call.1} parent=35 // pred_check
          %p287 = pneg %p88
        $region42: #{tpu_custom_call.1} parent=35 // pred_check_branch
          %289 = sbr.rel (%p287) target = $region44
        $region43: #{tpu_custom_call.1} parent=35 // pred_region
          %291 = dma.done %s283, 4096
        $region44: #{tpu_custom_call.1} parent=35 // pred_fallthru
          _
        %s292 = sand.u32 %s27, 1
        %s293 = scalar_lea.sflag [#allocation7], %s292
        %s294 = sand.u32 %s101, 1
        %s295 = scalar_lea.vmem [#allocation8], %s294
        // Predicated region
        $region45: #{tpu_custom_call.1} parent=35 // pred_check
          %p296 = pneg %p114
        $region46: #{tpu_custom_call.1} parent=35 // pred_check_branch
          %298 = sbr.rel (%p296) target = $region48
        $region47: #{tpu_custom_call.1} parent=35 // pred_region
          %300 = dma.done %s293, 16
        $region48: #{tpu_custom_call.1} parent=35 // pred_fallthru
          _
        %s301 = sand.u32 %s127, 1
        %s302 = scalar_lea.sflag [#allocation10], %s301
        %s303 = sand.u32 %s127, 1
        %s304 = scalar_lea.vmem [#allocation9], %s303
        // Predicated region
        $region49: #{tpu_custom_call.1} parent=35 // pred_check
          %p305 = pneg %p140
        $region50: #{tpu_custom_call.1} parent=35 // pred_check_branch
          %307 = sbr.rel (%p305) target = $region52
        $region51: #{tpu_custom_call.1} parent=35 // pred_region
          %309 = dma.done %s302, 16
        $region52: #{tpu_custom_call.1} parent=35 // pred_fallthru
          _
        %s310 = sand.u32 %s47, 1
        %s311 = scalar_lea.sflag [#allocation4], %s310
        %s312 = sand.u32 %s47, 1
        %s313 = smul.addr %s312, 128
        %s314 = scalar_lea.vmem [#allocation3], %s313
        %p315 = pneg %p60
        %p316 = pneg %p57
        %s317 = sand.u32 %s27, 1
        %s318 = scalar_lea.sflag [#allocation7], %s317
        %s319 = sand.u32 %s75, 1
        %s320 = smul.addr %s319, 256
        %s321 = scalar_lea.vmem [#allocation6], %s320
        %p322 = pneg %p88
        %p323 = pneg %p85
        %s324 = sand.u32 %s27, 1
        %s325 = scalar_lea.sflag [#allocation7], %s324
        %s326 = sand.u32 %s101, 1
        %s327 = scalar_lea.vmem [#allocation8], %s326
        %p328 = pneg %p114
        %p329 = pneg %p111
        %s330 = sand.u32 %s127, 1
        %s331 = scalar_lea.sflag [#allocation10], %s330
        %s332 = sand.u32 %s127, 1
        %s333 = scalar_lea.vmem [#allocation9], %s332
        %p334 = pneg %p140
        %p335 = pneg %p137
        %p336 = pneg %p166
        %p337 = pneg %p163
        %s338 = sand.u32 %s153, 1
        %s339 = scalar_lea.sflag [#allocation5], %s338
        %s340 = sand.u32 %s153, 1
        %s341 = smul.addr %s340, 64
        %s342 = scalar_lea.vmem [#allocation11], %s341
        %s343 = smul.u32 2, %s32
        %s344 = smul.u32 32, %s32
        %p345 = scmp.eq.s32.totalorder %s32, 0
        // Predicated region
        $region53: #{tpu_custom_call.1} parent=35 // pred_check
          %p346 = pneg %p345
        $region54: #{tpu_custom_call.1} parent=35 // pred_check_branch
          %348 = sbr.rel (%p346) target = $region56
        $region55: #{tpu_custom_call.1} parent=35 // pred_region
          %349 = vst [vmem:[#allocation2] sm:$0xff] 0.0
          %350 = vst [vmem:[#allocation2 + $0x8] sm:$0xff] 0.0
          %351 = vst [vmem:[#allocation2 + $0x10] sm:$0xff] 0.0
          %352 = vst [vmem:[#allocation2 + $0x18] sm:$0xff] 0.0
          %353 = vst [vmem:[#allocation2 + $0x20] sm:$0xff] 0.0
          %354 = vst [vmem:[#allocation2 + $0x28] sm:$0xff] 0.0
          %355 = vst [vmem:[#allocation2 + $0x30] sm:$0xff] 0.0
          %356 = vst [vmem:[#allocation2 + $0x38] sm:$0xff] 0.0
        $region56: #{tpu_custom_call.1} parent=35 // pred_fallthru
          _
        %v357 = vld [vmem:[#allocation2] sm:$0xff]
        %v358 = vld [vmem:[#allocation2 + $0x8] sm:$0xff]
        %v359 = vld [vmem:[#allocation2 + $0x10] sm:$0xff]
        %v360 = vld [vmem:[#allocation2 + $0x18] sm:$0xff]
        %v361 = vld [vmem:[#allocation2 + $0x20] sm:$0xff]
        %v362 = vld [vmem:[#allocation2 + $0x28] sm:$0xff]
        %v363 = vld [vmem:[#allocation2 + $0x30] sm:$0xff]
        %v364 = vld [vmem:[#allocation2 + $0x38] sm:$0xff]
        %v365 = vld [vmem:[%s276] sm:$0xff]
        %v366 = vld [vmem:[%s276 + $0x8] sm:$0xff]
        %v367 = vld [vmem:[%s276 + $0x10] sm:$0xff]
        %v368 = vld [vmem:[%s276 + $0x18] sm:$0xff]
        %v369 = vld [vmem:[%s276 + $0x20] sm:$0xff]
        %v370 = vld [vmem:[%s276 + $0x28] sm:$0xff]
        %v371 = vld [vmem:[%s276 + $0x30] sm:$0xff]
        %v372 = vld [vmem:[%s276 + $0x38] sm:$0xff]
        %v373 = vld [vmem:[%s276 + $0x40] sm:$0xff]
        %v374 = vld [vmem:[%s276 + $0x48] sm:$0xff]
        %v375 = vld [vmem:[%s276 + $0x50] sm:$0xff]
        %v376 = vld [vmem:[%s276 + $0x58] sm:$0xff]
        %v377 = vld [vmem:[%s276 + $0x60] sm:$0xff]
        %v378 = vld [vmem:[%s276 + $0x68] sm:$0xff]
        %v379 = vld [vmem:[%s276 + $0x70] sm:$0xff]
        %v380 = vld [vmem:[%s276 + $0x78] sm:$0xff]
        %v381 = vld [vmem:[%s286] sm:$0xff]
        %v382 = vld [vmem:[%s286 + $0x8] sm:$0xff]
        %v383 = vld [vmem:[%s286 + $0x10] sm:$0xff]
        %v384 = vld [vmem:[%s286 + $0x18] sm:$0xff]
        %v385 = vld [vmem:[%s286 + $0x20] sm:$0xff]
        %v386 = vld [vmem:[%s286 + $0x28] sm:$0xff]
        %v387 = vld [vmem:[%s286 + $0x30] sm:$0xff]
        %v388 = vld [vmem:[%s286 + $0x38] sm:$0xff]
        %v389 = vld [vmem:[%s286 + $0x40] sm:$0xff]
        %v390 = vld [vmem:[%s286 + $0x48] sm:$0xff]
        %v391 = vld [vmem:[%s286 + $0x50] sm:$0xff]
        %v392 = vld [vmem:[%s286 + $0x58] sm:$0xff]
        %v393 = vld [vmem:[%s286 + $0x60] sm:$0xff]
        %v394 = vld [vmem:[%s286 + $0x68] sm:$0xff]
        %v395 = vld [vmem:[%s286 + $0x70] sm:$0xff]
        %v396 = vld [vmem:[%s286 + $0x78] sm:$0xff]
        %v397 = vld [vmem:[%s286 + $0x80] sm:$0xff]
        %v398 = vld [vmem:[%s286 + $0x88] sm:$0xff]
        %v399 = vld [vmem:[%s286 + $0x90] sm:$0xff]
        %v400 = vld [vmem:[%s286 + $0x98] sm:$0xff]
        %v401 = vld [vmem:[%s286 + $0xa0] sm:$0xff]
        %v402 = vld [vmem:[%s286 + $0xa8] sm:$0xff]
        %v403 = vld [vmem:[%s286 + $0xb0] sm:$0xff]
        %v404 = vld [vmem:[%s286 + $0xb8] sm:$0xff]
        %v405 = vld [vmem:[%s286 + $0xc0] sm:$0xff]
        %v406 = vld [vmem:[%s286 + $0xc8] sm:$0xff]
        %v407 = vld [vmem:[%s286 + $0xd0] sm:$0xff]
        %v408 = vld [vmem:[%s286 + $0xd8] sm:$0xff]
        %v409 = vld [vmem:[%s286 + $0xe0] sm:$0xff]
        %v410 = vld [vmem:[%s286 + $0xe8] sm:$0xff]
        %v411 = vld [vmem:[%s286 + $0xf0] sm:$0xff]
        %v412 = vld [vmem:[%s286 + $0xf8] sm:$0xff]
        %413 = vmatpush.msra.mxu0 %v396
        %414 = vmatpush.msra.mxu0 %v395
        %415 = vmatpush.msra.mxu0 %v394
        %416 = vmatpush.msra.mxu0 %v393
        %417 = vmatpush.msra.mxu0 %v392
        %418 = vmatpush.msra.mxu0 %v391
        %419 = vmatpush.msra.mxu0 %v390
        %420 = vmatpush.msra.mxu0 %v389
        %421 = vmatpush.msra.mxu0 %v388
        %422 = vmatpush.msra.mxu0 %v387
        %423 = vmatpush.msra.mxu0 %v386
        %424 = vmatpush.msra.mxu0 %v385
        %425 = vmatpush.msra.mxu0 %v384
        %426 = vmatpush.msra.mxu0 %v383
        %427 = vmatpush.msra.mxu0 %v382
        %428 = vmatpush.msra.mxu0 %v381
        %429 = vmatmul.f32.gmra.mxu0 %v365
        %v430 = vpop.f32.mrf.mxu0
        %v431 = vadd.f32 0.0, %v430
        %432 = vmatmul.f32.gmra.mxu0 %v367
        %v433 = vpop.f32.mrf.mxu0
        %v434 = vadd.f32 0.0, %v433
        %435 = vmatmul.f32.gmra.mxu0 %v369
        %v436 = vpop.f32.mrf.mxu0
        %v437 = vadd.f32 0.0, %v436
        %438 = vmatmul.f32.gmra.mxu0 %v371
        %v439 = vpop.f32.mrf.mxu0
        %v440 = vadd.f32 0.0, %v439
        %441 = vmatmul.f32.gmra.mxu0 %v373
        %v442 = vpop.f32.mrf.mxu0
        %v443 = vadd.f32 0.0, %v442
        %444 = vmatmul.f32.gmra.mxu0 %v375
        %v445 = vpop.f32.mrf.mxu0
        %v446 = vadd.f32 0.0, %v445
        %447 = vmatmul.f32.gmra.mxu0 %v377
        %v448 = vpop.f32.mrf.mxu0
        %v449 = vadd.f32 0.0, %v448
        %450 = vmatmul.f32.gmra.mxu0 %v379
        %v451 = vpop.f32.mrf.mxu0
        %v452 = vadd.f32 0.0, %v451
        %453 = vdwg.mxu0
        %454 = vmatpush.msra.mxu0 %v412
        %455 = vmatpush.msra.mxu0 %v411
        %456 = vmatpush.msra.mxu0 %v410
        %457 = vmatpush.msra.mxu0 %v409
        %458 = vmatpush.msra.mxu0 %v408
        %459 = vmatpush.msra.mxu0 %v407
        %460 = vmatpush.msra.mxu0 %v406
        %461 = vmatpush.msra.mxu0 %v405
        %462 = vmatpush.msra.mxu0 %v404
        %463 = vmatpush.msra.mxu0 %v403
        %464 = vmatpush.msra.mxu0 %v402
        %465 = vmatpush.msra.mxu0 %v401
        %466 = vmatpush.msra.mxu0 %v400
        %467 = vmatpush.msra.mxu0 %v399
        %468 = vmatpush.msra.mxu0 %v398
        %469 = vmatpush.msra.mxu0 %v397
        %470 = vmatmul.f32.gmra.mxu0 %v366
        %v471 = vpop.f32.mrf.mxu0
        %v472 = vadd.f32 %v431, %v471
        %473 = vmatmul.f32.gmra.mxu0 %v368
        %v474 = vpop.f32.mrf.mxu0
        %v475 = vadd.f32 %v434, %v474
        %476 = vmatmul.f32.gmra.mxu0 %v370
        %v477 = vpop.f32.mrf.mxu0
        %v478 = vadd.f32 %v437, %v477
        %479 = vmatmul.f32.gmra.mxu0 %v372
        %v480 = vpop.f32.mrf.mxu0
        %v481 = vadd.f32 %v440, %v480
        %482 = vmatmul.f32.gmra.mxu0 %v374
        %v483 = vpop.f32.mrf.mxu0
        %v484 = vadd.f32 %v443, %v483
        %485 = vmatmul.f32.gmra.mxu0 %v376
        %v486 = vpop.f32.mrf.mxu0
        %v487 = vadd.f32 %v446, %v486
        %488 = vmatmul.f32.gmra.mxu0 %v378
        %v489 = vpop.f32.mrf.mxu0
        %v490 = vadd.f32 %v449, %v489
        %491 = vmatmul.f32.gmra.mxu0 %v380
        %v492 = vpop.f32.mrf.mxu0
        %v493 = vadd.f32 %v452, %v492
        %494 = vdwg.mxu0
        %v495 = vadd.f32 %v357, %v472
        %v496 = vadd.f32 %v358, %v475
        %v497 = vadd.f32 %v359, %v478
        %v498 = vadd.f32 %v360, %v481
        %v499 = vadd.f32 %v361, %v484
        %v500 = vadd.f32 %v362, %v487
        %v501 = vadd.f32 %v363, %v490
        %v502 = vadd.f32 %v364, %v493
        %503 = vst [vmem:[#allocation2] sm:$0xff] %v495
        %504 = vst [vmem:[#allocation2 + $0x8] sm:$0xff] %v496
        %505 = vst [vmem:[#allocation2 + $0x10] sm:$0xff] %v497
        %506 = vst [vmem:[#allocation2 + $0x18] sm:$0xff] %v498
        %507 = vst [vmem:[#allocation2 + $0x20] sm:$0xff] %v499
        %508 = vst [vmem:[#allocation2 + $0x28] sm:$0xff] %v500
        %509 = vst [vmem:[#allocation2 + $0x30] sm:$0xff] %v501
        %510 = vst [vmem:[#allocation2 + $0x38] sm:$0xff] %v502
        %p511 = scmp.eq.s32.totalorder %s32, 2
        // Predicated region
        $region57: #{tpu_custom_call.1} parent=35 // pred_check
          %p512 = pneg %p511
        $region58: #{tpu_custom_call.1} parent=35 // pred_check_branch
          %514 = sbr.rel (%p512) target = $region60
        $region59: #{tpu_custom_call.1} parent=35 // pred_region
          %v515 = vld [vmem:[#allocation2] sm:$0xff]
          %v516 = vld [vmem:[#allocation2 + $0x8] sm:$0xff]
          %v517 = vld [vmem:[#allocation2 + $0x10] sm:$0xff]
          %v518 = vld [vmem:[#allocation2 + $0x18] sm:$0xff]
          %v519 = vld [vmem:[#allocation2 + $0x20] sm:$0xff]
          %v520 = vld [vmem:[#allocation2 + $0x28] sm:$0xff]
          %v521 = vld [vmem:[#allocation2 + $0x30] sm:$0xff]
          %v522 = vld [vmem:[#allocation2 + $0x38] sm:$0xff]
          %v523 = vadd.f32 %v515, %v516
          %v524 = vadd.f32 %v523, %v517
          %v525 = vadd.f32 %v524, %v518
          %v526 = vadd.f32 %v525, %v519
          %v527 = vadd.f32 %v526, %v520
          %v528 = vadd.f32 %v527, %v521
          %v529 = vadd.f32 %v528, %v522
          %v530 = vrot.slane %v529, 4
          %v531 = vadd.f32 %v529, %v530
          %v532 = vrot.slane %v531, 2
          %v533 = vadd.f32 %v531, %v532
          %v534 = vrot.slane %v533, 1
          %v535 = vadd.f32 %v533, %v534
          %v536 = vrcp.pop 64.0
          %v537 = vmul.f32 64.0, %v536
          %v538 = vsub.f32 1.0, %v537
          %v539 = vmul.f32 %v536, %v538
          %v540 = vadd.f32 %v536, %v539
          %vm541 = vweird.f32 %v536
          %v542 = vsel %vm541, %v536, %v540
          %v543 = vmul.f32 %v535, %v542
          %v544 = vsub.f32 %v515, %v543
          %v545 = vsub.f32 %v516, %v543
          %v546 = vsub.f32 %v517, %v543
          %v547 = vsub.f32 %v518, %v543
          %v548 = vsub.f32 %v519, %v543
          %v549 = vsub.f32 %v520, %v543
          %v550 = vsub.f32 %v521, %v543
          %v551 = vsub.f32 %v522, %v543
          %v552 = vmul.f32 %v544, %v544
          %v553 = vmul.f32 %v545, %v545
          %v554 = vmul.f32 %v546, %v546
          %v555 = vmul.f32 %v547, %v547
          %v556 = vmul.f32 %v548, %v548
          %v557 = vmul.f32 %v549, %v549
          %v558 = vmul.f32 %v550, %v550
          %v559 = vmul.f32 %v551, %v551
          %v560 = vadd.f32 %v552, %v553
          %v561 = vadd.f32 %v560, %v554
          %v562 = vadd.f32 %v561, %v555
          %v563 = vadd.f32 %v562, %v556
          %v564 = vadd.f32 %v563, %v557
          %v565 = vadd.f32 %v564, %v558
          %v566 = vadd.f32 %v565, %v559
          %v567 = vrot.slane %v566, 4
          %v568 = vadd.f32 %v566, %v567
          %v569 = vrot.slane %v568, 2
          %v570 = vadd.f32 %v568, %v569
          %v571 = vrot.slane %v570, 1
          %v572 = vadd.f32 %v570, %v571
          %v573 = vmul.f32 %v572, %v542
          %v574 = vadd.f32 %v573, 1e-05
          %v575 = vrsqrt.pop %v574
          %v576 = vmul.f32 %v575, %v574
          %v577 = vmul.f32 %v576, %v575
          %v578 = vmul.f32 0.5, %v577
          %v579 = vsub.f32 1.5, %v578
          %v580 = vmul.f32 %v575, %v579
          %vm581 = vweird.f32 %v574
          %vm582 = vweird.f32 %v575
          %vm583 = vmor %vm581, %vm582
          %v584 = vsel %vm583, %v575, %v580
          %v585 = vmul.f32 %v544, %v584
          %v586 = vmul.f32 %v545, %v584
          %v587 = vmul.f32 %v546, %v584
          %v588 = vmul.f32 %v547, %v584
          %v589 = vmul.f32 %v548, %v584
          %v590 = vmul.f32 %v549, %v584
          %v591 = vmul.f32 %v550, %v584
          %v592 = vmul.f32 %v551, %v584
          %v593 = vld [vmem:[%s295] sm:$0x1]
          %v595 = vperm.slane %v593, 0
          %v597 = vmul.f32 %v595, %v585
          %v598 = vmul.f32 %v595, %v586
          %v599 = vmul.f32 %v595, %v587
          %v600 = vmul.f32 %v595, %v588
          %v601 = vmul.f32 %v595, %v589
          %v602 = vmul.f32 %v595, %v590
          %v603 = vmul.f32 %v595, %v591
          %v604 = vmul.f32 %v595, %v592
          %v605 = vld [vmem:[%s304] sm:$0x1]
          %v607 = vperm.slane %v605, 0
          %v609 = vadd.f32 %v597, %v607
          %v610 = vadd.f32 %v598, %v607
          %v611 = vadd.f32 %v599, %v607
          %v612 = vadd.f32 %v600, %v607
          %v613 = vadd.f32 %v601, %v607
          %v614 = vadd.f32 %v602, %v607
          %v615 = vadd.f32 %v603, %v607
          %v616 = vadd.f32 %v604, %v607
          %v617 = vmax.f32 %v609, 0.0
          %v618 = vmax.f32 %v610, 0.0
          %v619 = vmax.f32 %v611, 0.0
          %v620 = vmax.f32 %v612, 0.0
          %v621 = vmax.f32 %v613, 0.0
          %v622 = vmax.f32 %v614, 0.0
          %v623 = vmax.f32 %v615, 0.0
          %v624 = vmax.f32 %v616, 0.0
          %625 = vst [vmem:[%s342] sm:$0xff] %v617
          %626 = vst [vmem:[%s342 + $0x8] sm:$0xff] %v618
          %627 = vst [vmem:[%s342 + $0x10] sm:$0xff] %v619
          %628 = vst [vmem:[%s342 + $0x18] sm:$0xff] %v620
          %629 = vst [vmem:[%s342 + $0x20] sm:$0xff] %v621
          %630 = vst [vmem:[%s342 + $0x28] sm:$0xff] %v622
          %631 = vst [vmem:[%s342 + $0x30] sm:$0xff] %v623
          %632 = vst [vmem:[%s342 + $0x38] sm:$0xff] %v624
        $region60: #{tpu_custom_call.1} parent=35 // pred_fallthru
          _
        %s633 = sand.u32 %s153, 1
        %s634 = scalar_lea.sflag [#allocation5], %s633
        %s635 = sand.u32 %s153, 1
        %s636 = smul.addr %s635, 64
        %s637 = scalar_lea.vmem [#allocation11], %s636
        // Predicated region
        $region61: #{tpu_custom_call.1} parent=35 // pred_check
          %p638 = pneg %p163
        $region62: #{tpu_custom_call.1} parent=35 // pred_check_branch
          %640 = sbr.rel (%p638) target = $region64
        $region63: #{tpu_custom_call.1} parent=35 // pred_region
          %642 = vsyncadd %s634, 0
          %s643 = smul.addr %s31, 8
          %s644 = scalar_lea.hbm %s4, %s643
          %s645 = sshll.u32 %s637, 4
          %s646 = int_to_ptr.vmem [resolvable:$true] %s645
          %s647 = sshll.u32 %s644, 4
          %s648 = int_to_ptr.hbm [resolvable:$true] %s647
          %653 = dma.vmem_to_hbm [thread:$0]  %s646, 1024, %s648, %s634, 128, 384, 8
        $region64: #{tpu_custom_call.1} parent=35 // pred_fallthru
          _
      $region36: #{tpu_custom_call.1} parent=5 // pred_fallthru
        _
      %p654 = scmp.le.s32.totalorder 2, %s22
      // Predicated region
      $region65: #{tpu_custom_call.1} parent=5 // pred_check
        %p655 = pneg %p654
      $region66: #{tpu_custom_call.1} parent=5 // pred_check_branch
        %657 = sbr.rel (%p655) target = $region68
      $region67: #{tpu_custom_call.1} parent=5 // pred_region
        %s658 = ssub.s32 %s22, 2
        // Predicated region
        $region69: #{tpu_custom_call.1} parent=67 // pred_check
          %p659 = pneg %p169
        $region70: #{tpu_custom_call.1} parent=67 // pred_check_branch
          %661 = sbr.rel (%p659) target = $region72
        $region71: #{tpu_custom_call.1} parent=67 // pred_region
          %s662 = sand.u32 %s154, 1
          %s663 = scalar_lea.sflag [#allocation5], %s662
          %s664 = sand.u32 %s154, 1
          %s665 = smul.addr %s664, 64
          %s666 = scalar_lea.vmem [#allocation11], %s665
          %668 = dma.done %s663, 1024
        $region72: #{tpu_custom_call.1} parent=67 // pred_fallthru
          _
      $region68: #{tpu_custom_call.1} parent=5 // pred_fallthru
        _
    $region6: #{tpu_custom_call.1} parent=1 // loop_footer
      %s26 = sadd.s32 1, %s22
    $region7: #{tpu_custom_call.1} parent=1 // loop_footer_branch
      %21 = sbr.rel target = $region3
    $region8: #{tpu_custom_call.1} parent=1 // loop_exit
      _
    %669 = vsyncpa [#allocation4], 1
    %s670 = scalar_lea.sflag [#allocation4], 1
    %671 = vsyncpa %s670, 1
    %672 = vsyncpa [#allocation7], 1
    %s673 = scalar_lea.sflag [#allocation7], 1
    %674 = vsyncpa %s673, 1
    %675 = vsyncpa [#allocation10], 1
    %s676 = scalar_lea.sflag [#allocation10], 1
    %677 = vsyncpa %s676, 1
    %678 = vsyncpa [#allocation5], 1
    %s679 = scalar_lea.sflag [#allocation5], 1
    %680 = vsyncpa %s679, 1

</llo_original>
